<compile_context>
chip_gen: v7x
topology: tpu7x:2x2x1
jax: 0.10.0
libtpu: 0.0.40
codegen_flags: <defaults>
</compile_context>

<pallas_src>
import functools

import numpy as np
import jax
import jax.numpy as jnp
from jax.experimental import pallas as pl
from jax.experimental.pallas import tpu as pltpu


# ----------------------------------------------------------------------------
# Parameter construction (plain JAX glue) -- mirrors BlockLinear.__init__
# ----------------------------------------------------------------------------
def make_block_params(key, block_dims):
    """One parameter per block, torch.randn(size) semantics."""
    blocks = []
    for size in block_dims:
        key, sub = jax.random.split(key)
        shape = (size,) if isinstance(size, int) else tuple(size)
        blocks.append(jax.random.normal(sub, shape, dtype=jnp.float32))
    return blocks


def block_diag(blocks):
    """torch.block_diag semantics: 1-D blocks are treated as (1, n) rows."""
    mats = [b.reshape(1, -1) if b.ndim == 1 else b for b in blocks]
    rows = sum(m.shape[0] for m in mats)
    cols = sum(m.shape[1] for m in mats)
    full = jnp.zeros((rows, cols), dtype=mats[0].dtype)
    r = c = 0
    for m in mats:
        full = full.at[r:r + m.shape[0], c:c + m.shape[1]].set(m)
        r += m.shape[0]
        c += m.shape[1]
    return full


# ----------------------------------------------------------------------------
# Static helpers (tiling, per-row-tile K windows, VMEM budget)
# ----------------------------------------------------------------------------
def _round_up(x, m):
    return -(-x // m) * m


def _choose_tiles(R, C, lanes, tm, tn, tk, extra_parallel=1):
    """Clamp/derive tile sizes.  `lanes` = trailing (lane) output axis length."""
    rp8 = _round_up(R, 8)
    if tm is None:
        # Re-read-aware: modest R -> one row tile, the big input is streamed once.
        tm = rp8 if rp8 <= 512 else 256
    tm = _round_up(min(tm, rp8), 8)
    tn = 512 if tn is None else tn
    tn = _round_up(min(tn, _round_up(lanes, 128)), 128)
    tk = 512 if tk is None else tk
    tk = _round_up(min(tk, _round_up(C, 128)), 128)

    # v7x megacore: keep >= 2 parallel grid points whenever the problem can split.
    def parallel_points(tn_):
        return (extra_parallel * (_round_up(R, tm) // tm)
                * (_round_up(lanes, tn_) // tn_))

    while parallel_points(tn) < 2 and tn > 128:
        tn = max(128, _round_up(tn // 2, 128))
    return tm, tn, tk


def _k_windows(block_shapes, R, Rp, Cp, tm, tk):
    """Per-row-tile contiguous window of K tiles that can hold nonzero weight."""
    gi = Rp // tm
    gk_total = Cp // tk
    spans, r, c = [], 0, 0
    for (br, bc) in block_shapes:
        spans.append((r, r + br, c, c + bc))
        r += br
        c += bc
    k_lo = np.zeros(gi, np.int32)
    k_cnt = np.ones(gi, np.int32)
    for i in range(gi):
        r0, r1 = i * tm, min((i + 1) * tm, R)
        c_lo = c_hi = None
        for (br0, br1, bc0, bc1) in spans:
            if br0 < r1 and br1 > r0:
                c_lo = bc0 if c_lo is None else min(c_lo, bc0)
                c_hi = bc1 if c_hi is None else max(c_hi, bc1)
        if c_lo is None:                       # defensive; cannot happen for gi >= 1
            c_lo, c_hi = 0, 1
        k_lo[i] = c_lo // tk
        k_cnt[i] = (c_hi - 1) // tk - k_lo[i] + 1
    k_act = int(k_cnt.max())
    # Shift windows down where needed so k_start + k_act stays in bounds; any extra
    # tile pulled in is all-zero for that row tile, so correctness is unaffected.
    k_start = np.minimum(k_lo, gk_total - k_act).astype(np.int32)
    return k_start, k_act


def _vmem_limit(tm, tn, tk, w_bytes, x_bytes, o_bytes, acc_in_out, has_bias):
    need = (2 * tm * tk * w_bytes + 2 * tk * tn * x_bytes + 2 * tm * tn * o_bytes
            + (0 if acc_in_out else tm * tn * 4)
            + (2 * tn * 4 if has_bias else 0))
    # Lift v5e's 16 MiB scoped default; cap at 48 MiB so compiler-internal scratch
    # and semaphores still fit under v7x's 64 MiB of physical per-TC VMEM.
    return int(min(max(2 * need, 32 * 1024 * 1024), 48 * 1024 * 1024))


# ----------------------------------------------------------------------------
# Pallas kernel body (shared by the folded and the native-layout batched paths)
# ----------------------------------------------------------------------------
def _make_kernel(k_axis, has_bias, acc_in_out):
    """refs = (k_start_smem, w, x, [bias], out, [acc_scratch])."""

    def kernel(*refs):
        pos = 1                      # refs[0] = scalar-prefetched k_start (unused here)
        w_ref = refs[pos]; pos += 1
        x_ref = refs[pos]; pos += 1
        b_ref = None
        if has_bias:
            b_ref = refs[pos]; pos += 1
        o_ref = refs[pos]; pos += 1
        acc_ref = o_ref if acc_in_out else refs[pos]

        k = pl.program_id(k_axis)

        @pl.when(k == 0)
        def _init():
            acc_ref[...] = jnp.zeros_like(acc_ref)

        w = w_ref[...]
        x = x_ref[...]
        if w.dtype != x.dtype:
            # Persisted bf16 weights with f32 activations (or vice versa): promote
            # per-tile in VMEM -- the HBM read already happened at the narrow width.
            ct = jnp.promote_types(w.dtype, x.dtype)
            w = w.astype(ct)
            x = x.astype(ct)
        acc_ref[...] += jnp.dot(w, x, preferred_element_type=jnp.float32
                                ).astype(acc_ref.dtype)

        if has_bias or not acc_in_out:
            @pl.when(k == pl.num_programs(k_axis) - 1)
            def _writeback():
                if acc_in_out:                       # f32 output, bias fused in-place
                    o_ref[...] += b_ref[...].astype(o_ref.dtype)
                else:
                    out = acc_ref[...]
                    if has_bias:
                        out = out + b_ref[...]
                    o_ref[...] = out.astype(o_ref.dtype)

    return kernel


# ----------------------------------------------------------------------------
# Folded path: (R, C) @ (C, M) with every non-contracted dim folded into M
# ----------------------------------------------------------------------------
def _matmul_folded(w, x2d, bias_m, out_dtype, block_shapes, tm, tn, tk):
    R, C = w.shape
    M = x2d.shape[1]
    tm, tn, tk = _choose_tiles(R, C, M, tm, tn, tk, extra_parallel=1)
    Rp, Mp, Cp = _round_up(R, tm), _round_up(M, tn), _round_up(C, tk)
    gi, gj = Rp // tm, Mp // tn
    k_start, gk = _k_windows(block_shapes, R, Rp, Cp, tm, tk)

    if (Rp, Cp) != (R, C):                # zero-pad only when misaligned (exact)
        w = jnp.pad(w, ((0, Rp - R), (0, Cp - C)))
    if (Cp, Mp) != (C, M):
        x2d = jnp.pad(x2d, ((0, Cp - C), (0, Mp - M)))

    has_bias = bias_m is not None
    acc_in_out = jnp.dtype(out_dtype) == jnp.dtype(jnp.float32)

    in_specs = [
        # NOTE: when gi == gk == 1 the weight tile is grid-resident; a
        # pipeline_mode=pl.Buffered(1) would halve its VMEM footprint (skipped:
        # tiny win for these weight sizes vs. API-portability risk).
        pl.BlockSpec((tm, tk), lambda i, j, k, ks: (i, ks[i] + k)),
        pl.BlockSpec((tk, tn), lambda i, j, k, ks: (ks[i] + k, j)),
    ]
    inputs = [w, x2d]
    if has_bias:
        bias_m = bias_m.astype(jnp.float32)
        if bias_m.shape[0] != Mp:
            bias_m = jnp.pad(bias_m, (0, Mp - bias_m.shape[0]))
        in_specs.append(pl.BlockSpec((1, tn), lambda i, j, k, ks: (0, j)))
        inputs.append(bias_m.reshape(1, Mp))

    w_b = jnp.dtype(w.dtype).itemsize
    x_b = jnp.dtype(x2d.dtype).itemsize
    o_b = jnp.dtype(out_dtype).itemsize
    cost = pl.CostEstimate(
        flops=2 * tm * tk * tn * gi * gj * gk, transcendentals=0,
        bytes_accessed=int(gi * gj * gk * (tm * tk * w_b + tk * tn * x_b)
                           + Rp * Mp * o_b))

    out_p = pl.pallas_call(
        _make_kernel(k_axis=2, has_bias=has_bias, acc_in_out=acc_in_out),
        out_shape=jax.ShapeDtypeStruct((Rp, Mp), out_dtype),
        grid_spec=pltpu.PrefetchScalarGridSpec(
            num_scalar_prefetch=1,
            grid=(gi, gj, gk),                          # active K window axis last
            in_specs=in_specs,
            out_specs=pl.BlockSpec((tm, tn), lambda i, j, k, ks: (i, j)),
            scratch_shapes=(() if acc_in_out
                            else (pltpu.VMEM((tm, tn), jnp.float32),))),
        compiler_params=pltpu.CompilerParams(
            dimension_semantics=("parallel", "parallel", "arbitrary"),
            vmem_limit_bytes=_vmem_limit(tm, tn, tk, w_b, x_b, o_b,
                                         acc_in_out, has_bias)),
        cost_estimate=cost,
    )(jnp.asarray(k_start), *inputs)

    if (Rp, Mp) != (R, M):
        out_p = out_p[:R, :M]
    return out_p


# ----------------------------------------------------------------------------
# Native-layout batched path: (R, C) @ (B, C, N) -> (B, R, N), no transposes
# ----------------------------------------------------------------------------
def _matmul_batched(w, x3d, bias_n, out_dtype, block_shapes, tm, tn, tk):
    R, C = w.shape
    B, _, N = x3d.shape
    tm, tn, tk = _choose_tiles(R, C, N, tm, tn, tk, extra_parallel=B)
    Rp, Np, Cp = _round_up(R, tm), _round_up(N, tn), _round_up(C, tk)
    gi, gj = Rp // tm, Np // tn
    k_start, gk = _k_windows(block_shapes, R, Rp, Cp, tm, tk)

    if (Rp, Cp) != (R, C):
        w = jnp.pad(w, ((0, Rp - R), (0, Cp - C)))
    if (Cp, Np) != (C, N):
        x3d = jnp.pad(x3d, ((0, 0), (0, Cp - C), (0, Np - N)))

    has_bias = bias_n is not None
    acc_in_out = jnp.dtype(out_dtype) == jnp.dtype(jnp.float32)

    in_specs = [
        pl.BlockSpec((tm, tk), lambda b, i, j, k, ks: (i, ks[i] + k)),
        pl.BlockSpec((None, tk, tn), lambda b, i, j, k, ks: (b, ks[i] + k, j)),
    ]
    inputs = [w, x3d]
    if has_bias:
        bias_n = bias_n.astype(jnp.float32)
        if bias_n.shape[0] != Np:
            bias_n = jnp.pad(bias_n, (0, Np - bias_n.shape[0]))
        in_specs.append(pl.BlockSpec((1, tn), lambda b, i, j, k, ks: (0, j)))
        inputs.append(bias_n.reshape(1, Np))

    w_b = jnp.dtype(w.dtype).itemsize
    x_b = jnp.dtype(x3d.dtype).itemsize
    o_b = jnp.dtype(out_dtype).itemsize
    cost = pl.CostEstimate(
        flops=2 * tm * tk * tn * B * gi * gj * gk, transcendentals=0,
        bytes_accessed=int(B * gi * gj * gk * (tm * tk * w_b + tk * tn * x_b)
                           + B * Rp * Np * o_b))

    out_p = pl.pallas_call(
        _make_kernel(k_axis=3, has_bias=has_bias, acc_in_out=acc_in_out),
        out_shape=jax.ShapeDtypeStruct((B, Rp, Np), out_dtype),
        grid_spec=pltpu.PrefetchScalarGridSpec(
            num_scalar_prefetch=1,
            grid=(B, gi, gj, gk),                       # reduction axis last
            in_specs=in_specs,
            out_specs=pl.BlockSpec((None, tm, tn),
                                   lambda b, i, j, k, ks: (b, i, j)),
            scratch_shapes=(() if acc_in_out
                            else (pltpu.VMEM((tm, tn), jnp.float32),))),
        compiler_params=pltpu.CompilerParams(
            dimension_semantics=("parallel", "parallel", "parallel", "arbitrary"),
            vmem_limit_bytes=_vmem_limit(tm, tn, tk, w_b, x_b, o_b,
                                         acc_in_out, has_bias)),
        cost_estimate=cost,
    )(jnp.asarray(k_start), *inputs)

    if (Rp, Np) != (R, N):
        out_p = out_p[:, :R, :N]
    return out_p


# ----------------------------------------------------------------------------
# Forward wrapper (path selection + torch-faithful bias broadcasting)
# ----------------------------------------------------------------------------
@functools.partial(jax.jit, static_argnames=("block_shapes", "tm", "tn", "tk"))
def block_linear_forward(full, inp, bias=None, *, block_shapes,
                         tm=None, tn=None, tk=None):
    """full: (R, C) block-diag; inp: (..., C, N); bias: (S,) or None -> (..., R, N).

    `block_shapes` is the static tuple of per-block (rows, cols) as laid out by
    torch.block_diag (1-D blocks count as (1, n)); it drives the zero-tile skipping.
    """
    R, C = full.shape
    if inp.shape[-2] != C:
        raise ValueError(f"inp.shape[-2]={inp.shape[-2]} != weight cols {C}")
    lead = inp.shape[:-2]
    N = inp.shape[-1]
    out_dtype = jnp.promote_types(full.dtype, inp.dtype)

    # torch broadcasting: bias of shape (sum(block_dims),) adds along the trailing
    # N axis of the (..., R, N) output (requires S == N or S == 1, like torch).
    bias_n = None if bias is None else jnp.broadcast_to(bias, (N,)).astype(jnp.float32)

    reps = int(np.prod(lead, dtype=np.int64)) if lead else 1

    if N >= 128:
        # Native-layout path: collapsing leading dims is a free reshape; the kernel
        # reads (B, C, N) directly -- no wrapper transpose HBM passes.
        x3d = inp.reshape((reps, C, N))
        out3 = _matmul_batched(full, x3d, bias_n, out_dtype, block_shapes, tm, tn, tk)
        return out3.reshape(lead + (R, N))

    # Lane-sparse N: fold every non-contracted dim into one lane axis M so stores
    # stay lane-dense (the single transpose pass is worth it for small N).
    x2d = jnp.moveaxis(inp, -2, 0).reshape(C, -1)
    bias_m = None if bias_n is None else jnp.tile(bias_n, reps)
    out2d = _matmul_folded(full, x2d, bias_m, out_dtype, block_shapes, tm, tn, tk)
    return jnp.moveaxis(out2d.reshape((R,) + lead + (N,)), 0, -2)


class BlockLinearPallas:
    """JAX/Pallas equivalent of the PyTorch BlockLinear module (forward only)."""

    def __init__(self, block_dims, bias=False, key=None, weight_dtype=None):
        key = jax.random.PRNGKey(0) if key is None else key
        self.blocks = make_block_params(key, block_dims)
        full = block_diag(self.blocks)
        # Persist the weight in its compute dtype once at init (e.g. bf16 for 2x MXU
        # rate and half the weight HBM traffic) -- no per-call cast in the wrapper.
        self.full = full if weight_dtype is None else full.astype(weight_dtype)
        self.block_shapes = tuple(
            (1, int(b.shape[0])) if b.ndim == 1 else tuple(int(d) for d in b.shape)
            for b in self.blocks)
        # torch: nn.Parameter(torch.zeros(sum(block_dims))) if bias else None
        # (only well-defined for int block_dims, exactly like the torch code).
        self.bias = jnp.zeros((sum(block_dims),), jnp.float32) if bias else None

    def __call__(self, inp, **tile_overrides):
        return block_linear_forward(self.full, inp, self.bias,
                                    block_shapes=self.block_shapes,
                                    **tile_overrides)


# ----------------------------------------------------------------------------
# Demo / self-test
# ----------------------------------------------------------------------------
if __name__ == "__main__":
    key = jax.random.PRNGKey(0)
    k_param, k_inp, k_inp2, k_inp3, k_bias = jax.random.split(key, 5)

    # --- 1. Main demo: square blocks, N < 128 -> folded path, f32 acc-in-output
    block_dims = [[8, 8], [8, 8], [16, 16]]
    layer = BlockLinearPallas(block_dims, bias=False, key=k_param)
    R, C = layer.full.shape
    inp = jax.random.normal(k_inp, (2, C, 16), dtype=jnp.float32)
    out = jax.block_until_ready(layer(inp))
    ref = jnp.einsum("rc,bcn->brn", layer.full, inp)
    assert out.shape == (2, R, 16)
    assert jnp.allclose(out, ref, atol=1e-5, rtol=1e-5)

    # --- 2. Native-layout batched path + zero-tile skipping (1 of 4 K tiles read
    #        per row tile) ----------------------------------------------------
    layer2 = BlockLinearPallas([[16, 128]] * 4, bias=False, key=k_param)
    inp2 = jax.random.normal(k_inp2, (2, layer2.full.shape[1], 256), jnp.float32)
    out2 = jax.block_until_ready(layer2(inp2, tm=16, tk=128))
    ref2 = jnp.einsum("rc,bcn->brn", layer2.full, inp2)
    assert jnp.allclose(out2, ref2, atol=1e-4, rtol=1e-4)

    # --- 3. Skipping with a multi-tile K window (accumulation across k) -------
    layer3 = BlockLinearPallas([[16, 256], [16, 256]], bias=False, key=k_param)
    inp3 = jax.random.normal(k_inp3, (2, layer3.full.shape[1], 128), jnp.float32)
    out3 = jax.block_until_ready(layer3(inp3, tm=16, tk=128))
    ref3 = jnp.einsum("rc,bcn->brn", layer3.full, inp3)
    assert jnp.allclose(out3, ref3, atol=1e-4, rtol=1e-4)

    # --- 4. Persisted bf16 weights, f32 activations (promoted per tile) -------
    layer_bf = BlockLinearPallas(block_dims, bias=False, key=k_param,
                                 weight_dtype=jnp.bfloat16)
    out_bf = jax.block_until_ready(layer_bf(inp))
    ref_bf = jnp.einsum("rc,bcn->brn", layer_bf.full.astype(jnp.float32), inp)
    assert out_bf.dtype == jnp.float32
    assert jnp.allclose(out_bf, ref_bf, atol=1e-4, rtol=1e-4)

    # --- 5. bf16 in / bf16 out -> f32 scratch-accumulator path, native layout --
    inp_bf = jax.random.normal(k_inp, (2, C, 256), dtype=jnp.bfloat16)
    out_bf2 = jax.block_until_ready(layer_bf(inp_bf))
    ref_bf2 = jnp.einsum("rc,bcn->brn", layer_bf.full.astype(jnp.float32),
                         inp_bf.astype(jnp.float32))
    assert out_bf2.dtype == jnp.bfloat16
    assert jnp.allclose(out_bf2.astype(jnp.float32), ref_bf2, atol=0.25, rtol=0.05)

    # --- 6. bias=True (int block dims; torch broadcasts bias along N), bias add
    #        fused into the kernel writeback ----------------------------------
    layer_b = BlockLinearPallas([4, 4], bias=True, key=k_param)
    layer_b.bias = jax.random.normal(k_bias, layer_b.bias.shape, jnp.float32)
    inp_b = jax.random.normal(k_inp, (2, 8, 8), dtype=jnp.float32)
    out_b = jax.block_until_ready(layer_b(inp_b))
    ref_b = jnp.einsum("rc,bcn->brn", layer_b.full, inp_b) + layer_b.bias
    assert jnp.allclose(out_b, ref_b, atol=1e-5, rtol=1e-5)

    print("KERNEL_OK")
</pallas_src>

<mosaic_0001>
module attributes {stable_mosaic.version = 11 : i64} {
  func.func @kernel(%arg0: i32, %arg1: i32, %arg2: i32, %arg3: memref<1xi32, #tpu.memory_space<smem>>, %arg4: memref<32x128xf32, #tpu.memory_space<vmem>>, %arg5: memref<128x128xf32, #tpu.memory_space<vmem>>, %arg6: memref<32x128xf32, #tpu.memory_space<vmem>>) attributes {dimension_semantics = [#tpu.dimension_semantics<parallel>, #tpu.dimension_semantics<parallel>, #tpu.dimension_semantics<arbitrary>], iteration_bounds = array<i64: 1, 1, 1>, scalar_prefetch = 1 : i64, scratch_operands = 0 : i64, tpu.core_type = #tpu.core_type<tc>, window_params = [{transform_indices = @transform_0, window_bounds = array<i64: 32, 128>}, {transform_indices = @transform_1, window_bounds = array<i64: 128, 128>}, {transform_indices = @transform_2, window_bounds = array<i64: 32, 128>}]} {
    %c0_i32 = arith.constant 0 : i32
    %0 = arith.cmpi eq, %arg2, %c0_i32 : i32
    %1 = arith.extui %0 : i1 to i32
    %c0_i32_0 = arith.constant 0 : i32
    %2 = arith.cmpi ne, %1, %c0_i32_0 : i32
    scf.if %2 {
      %cst_8 = arith.constant 0.000000e+00 : f32
      %9 = vector.broadcast %cst_8 : f32 to vector<32x128xf32>
      %c0_9 = arith.constant 0 : index
      %c0_10 = arith.constant 0 : index
      %10 = vector.load %arg6[%c0_9, %c0_10] : memref<32x128xf32, #tpu.memory_space<vmem>>, vector<32x128xf32>
      tpu.vector_store %arg6[%c0_9, %c0_10], %9 {strides = array<i32>} : memref<32x128xf32, #tpu.memory_space<vmem>>, vector<32x128xf32>,
    } else {
    }
    %c0 = arith.constant 0 : index
    %c0_1 = arith.constant 0 : index
    %3 = vector.load %arg4[%c0, %c0_1] : memref<32x128xf32, #tpu.memory_space<vmem>>, vector<32x128xf32>
    %c0_2 = arith.constant 0 : index
    %c0_3 = arith.constant 0 : index
    %4 = vector.load %arg5[%c0_2, %c0_3] : memref<128x128xf32, #tpu.memory_space<vmem>>, vector<128x128xf32>
    %c0_4 = arith.constant 0 : index
    %c0_5 = arith.constant 0 : index
    %5 = vector.load %arg6[%c0_4, %c0_5] : memref<32x128xf32, #tpu.memory_space<vmem>>, vector<32x128xf32>
    %cst = arith.constant dense<0.000000e+00> : vector<32x128xf32>
    %6 = tpu.matmul %3, %4, %cst {dimension_numbers = #tpu.dot_dimension_numbers<[1], [0], [0], [1], [0, 0, 1, 1], [], []>} : vector<32x128xf32>, vector<128x128xf32>, vector<32x128xf32> -> vector<32x128xf32>
    %7 = arith.addf %5, %6 : vector<32x128xf32>
    %c0_6 = arith.constant 0 : index
    %c0_7 = arith.constant 0 : index
    %8 = vector.load %arg6[%c0_6, %c0_7] : memref<32x128xf32, #tpu.memory_space<vmem>>, vector<32x128xf32>
    tpu.vector_store %arg6[%c0_6, %c0_7], %7 {strides = array<i32>} : memref<32x128xf32, #tpu.memory_space<vmem>>, vector<32x128xf32>,
    return
  }
  func.func @transform_0(%arg0: i32, %arg1: i32, %arg2: i32, %arg3: memref<1xi32, #tpu.memory_space<smem>>) -> (i32, i32) {
    %0 = arith.index_cast %arg0 : i32 to index
    %1 = memref.load %arg3[%0] : memref<1xi32, #tpu.memory_space<smem>>
    %2 = arith.addi %1, %arg2 : i32
    %c0_i32 = arith.constant 0 : i32
    return %arg0, %2 : i32, i32
  }
  func.func @transform_1(%arg0: i32, %arg1: i32, %arg2: i32, %arg3: memref<1xi32, #tpu.memory_space<smem>>) -> (i32, i32) {
    %0 = arith.index_cast %arg0 : i32 to index
    %1 = memref.load %arg3[%0] : memref<1xi32, #tpu.memory_space<smem>>
    %2 = arith.addi %1, %arg2 : i32
    %c0_i32 = arith.constant 0 : i32
    return %2, %arg1 : i32, i32
  }
  func.func @transform_2(%arg0: i32, %arg1: i32, %arg2: i32, %arg3: memref<1xi32, #tpu.memory_space<smem>>) -> (i32, i32) {
    %c0_i32 = arith.constant 0 : i32
    return %arg0, %arg1 : i32, i32
  }
}

</mosaic_0001>

<llo_original>
// kernel: block_linear_forward.1
$region0: #{block_linear_forward.1}
  #allocation0 [shape = 'u32[]', space=smem, size = 0x4, offset = 0x4, fixed_abs, tag = 'smem constant byte address 0x4 - core index']
  #allocation1 [shape = 'u32[144,128]{1,0:T(1,128)}', space=vmem, size = 0x12000, scoped, tag = 'internal scratch']
  #allocation2 [shape = 's32[1]{0}', space=sflag, size = 0x4, scoped, tag = 'scoped memory for block_linear_forward.1']
  #allocation3 [shape = 's32[1]{0:T(128)S(6)}', space=smem, size = 0x200, scoped, tag = 'prefetched SMEM operand 0']
  %s0 = inlined_call_operand.<no memory space> [shape: s32[1], index: 0, kind: input, shape index: {}]
  %s1 = inlined_call_operand.vmem [shape: f32[32,128], index: 1, kind: input, shape index: {}]
  %s2 = inlined_call_operand.vmem [shape: f32[128,128], index: 2, kind: input, shape index: {}]
  %s3 = inlined_call_operand.vmem [shape: f32[32,128], index: 3, kind: output, shape index: {}]
  %s4 = sld [smem:[#allocation0]]
  $region22: #{block_linear_forward.1} parent=0
    _
  %s6 = ssub.s32 1, %s4
  %s7 = scalar_select 0, %s6, %s4
  %8 = sst [smem:[#allocation3]] %s0
  // Predicated region
  $region2: #{block_linear_forward.1} parent=0 // pred_check
    _
  $region3: #{block_linear_forward.1} parent=0 // pred_check_branch
    %10 = sbr.rel (0) target = $region5
  $region4: #{block_linear_forward.1} parent=0 // pred_region
    %s11 = sld [smem:[#allocation3]]
    %s12 = sadd.s32 %s11, 0
    %p13 = scmp.lt.s32.totalorder %s12, 0
    %s14 = scalar_select %p13, %s12, 0
    %s15 = smul.addr %s14, 8
    %s16 = scalar_lea.vmem %s1, %s15
    %s17 = sld [smem:[#allocation3]]
    %s18 = sadd.s32 %s17, 0
  $region5: #{block_linear_forward.1} parent=0 // pred_fallthru
    _
  // Predicated region
  $region6: #{block_linear_forward.1} parent=0 // pred_check
    _
  $region7: #{block_linear_forward.1} parent=0 // pred_check_branch
    %20 = sbr.rel (0) target = $region9
  $region8: #{block_linear_forward.1} parent=0 // pred_region
    %s21 = sld [smem:[#allocation3]]
    %s22 = sadd.s32 %s21, 0
    %s23 = smul.u32 16, %s22
    %p24 = scmp.lt.s32.totalorder %s23, 15
    %s25 = scalar_select %p24, %s23, 15
    %s26 = smul.addr %s25, 8
    %s27 = scalar_lea.vmem %s2, %s26
    %s28 = sld [smem:[#allocation3]]
    %s29 = sadd.s32 %s28, 0
    %s30 = smul.u32 16, %s29
  $region9: #{block_linear_forward.1} parent=0 // pred_fallthru
    _
  %s31 = sld [smem:[#allocation3]]
  %s32 = sadd.s32 %s31, 0
  %p33 = scmp.lt.s32.totalorder %s32, 0
  %s34 = scalar_select %p33, %s32, 0
  %s35 = smul.addr %s34, 8
  %s36 = scalar_lea.vmem %s1, %s35
  %s37 = sld [smem:[#allocation3]]
  %s38 = sadd.s32 %s37, 0
  %s39 = smul.u32 16, %s38
  %p40 = scmp.lt.s32.totalorder %s39, 15
  %s41 = scalar_select %p40, %s39, 15
  %s42 = smul.addr %s41, 8
  %s43 = scalar_lea.vmem %s2, %s42
  %s44 = sld [smem:[#allocation3]]
  %s45 = sadd.s32 %s44, 0
  %p46 = scmp.lt.s32.totalorder %s45, 0
  %s47 = scalar_select %p46, %s45, 0
  %s48 = smul.addr %s47, 8
  %s49 = scalar_lea.vmem %s1, %s48
  %s50 = sld [smem:[#allocation3]]
  %s51 = sadd.s32 %s50, 0
  %s52 = sld [smem:[#allocation3]]
  %s53 = sadd.s32 %s52, 0
  %s54 = smul.u32 16, %s53
  %p55 = scmp.lt.s32.totalorder %s54, 15
  %s56 = scalar_select %p55, %s54, 15
  %s57 = smul.addr %s56, 8
  %s58 = scalar_lea.vmem %s2, %s57
  %s59 = sld [smem:[#allocation3]]
  %s60 = sadd.s32 %s59, 0
  %s61 = smul.u32 16, %s60
  %p62 = scmp.eq.s32.totalorder 0, 0
  // Predicated region
  $region10: #{block_linear_forward.1} parent=0 // pred_check
    %p63 = pneg %p62
  $region11: #{block_linear_forward.1} parent=0 // pred_check_branch
    %65 = sbr.rel (%p63) target = $region13
  $region12: #{block_linear_forward.1} parent=0 // pred_region
    %66 = vst [vmem:[%s3] sm:$0xff] 0.0
    %67 = vst [vmem:[%s3 + $0x8] sm:$0xff] 0.0
    %68 = vst [vmem:[%s3 + $0x10] sm:$0xff] 0.0
    %69 = vst [vmem:[%s3 + $0x18] sm:$0xff] 0.0
  $region13: #{block_linear_forward.1} parent=0 // pred_fallthru
    _
  %v70 = vld [vmem:[%s49] sm:$0xff]
  %v71 = vld [vmem:[%s49 + $0x8] sm:$0xff]
  %v72 = vld [vmem:[%s49 + $0x10] sm:$0xff]
  %v73 = vld [vmem:[%s49 + $0x18] sm:$0xff]
  %v74 = vld [vmem:[%s58] sm:$0xff]
  %v75 = vld [vmem:[%s58 + $0x8] sm:$0xff]
  %v76 = vld [vmem:[%s58 + $0x10] sm:$0xff]
  %v77 = vld [vmem:[%s58 + $0x18] sm:$0xff]
  %v78 = vld [vmem:[%s58 + $0x20] sm:$0xff]
  %v79 = vld [vmem:[%s58 + $0x28] sm:$0xff]
  %v80 = vld [vmem:[%s58 + $0x30] sm:$0xff]
  %v81 = vld [vmem:[%s58 + $0x38] sm:$0xff]
  %v82 = vld [vmem:[%s58 + $0x40] sm:$0xff]
  %v83 = vld [vmem:[%s58 + $0x48] sm:$0xff]
  %v84 = vld [vmem:[%s58 + $0x50] sm:$0xff]
  %v85 = vld [vmem:[%s58 + $0x58] sm:$0xff]
  %v86 = vld [vmem:[%s58 + $0x60] sm:$0xff]
  %v87 = vld [vmem:[%s58 + $0x68] sm:$0xff]
  %v88 = vld [vmem:[%s58 + $0x70] sm:$0xff]
  %v89 = vld [vmem:[%s58 + $0x78] sm:$0xff]
  %v90 = vld [vmem:[%s3] sm:$0xff]
  %v91 = vld [vmem:[%s3 + $0x8] sm:$0xff]
  %v92 = vld [vmem:[%s3 + $0x10] sm:$0xff]
  %v93 = vld [vmem:[%s3 + $0x18] sm:$0xff]
  %94 = vmatprep.subr.mxu0 0.0
  %95 = vmatpush1.msra.mxu0 %v74
  %96 = vmatprep.subr.mxu0 0.0
  %97 = vmatpush1.msra.mxu0 %v75
  %98 = vmatprep.subr.mxu0 0.0
  %99 = vmatpush1.msra.mxu0 %v76
  %100 = vmatprep.subr.mxu0 0.0
  %101 = vmatpush1.msra.mxu0 %v77
  %102 = vmatprep.subr.mxu0 0.0
  %103 = vmatpush1.msra.mxu0 %v78
  %104 = vmatprep.subr.mxu0 0.0
  %105 = vmatpush1.msra.mxu0 %v79
  %106 = vmatprep.subr.mxu0 0.0
  %107 = vmatpush1.msra.mxu0 %v80
  %108 = vmatprep.subr.mxu0 0.0
  %109 = vmatpush1.msra.mxu0 %v81
  %110 = vmatprep.subr.mxu0 0.0
  %111 = vmatpush1.msra.mxu0 %v82
  %112 = vmatprep.subr.mxu0 0.0
  %113 = vmatpush1.msra.mxu0 %v83
  %114 = vmatprep.subr.mxu0 0.0
  %115 = vmatpush1.msra.mxu0 %v84
  %116 = vmatprep.subr.mxu0 0.0
  %117 = vmatpush1.msra.mxu0 %v85
  %118 = vmatprep.subr.mxu0 0.0
  %119 = vmatpush1.msra.mxu0 %v86
  %120 = vmatprep.subr.mxu0 0.0
  %121 = vmatpush1.msra.mxu0 %v87
  %122 = vmatprep.subr.mxu0 0.0
  %123 = vmatpush1.msra.mxu0 %v88
  %124 = vmatprep.subr.mxu0 0.0
  %125 = vmatpush1.msra.mxu0 %v89
  %126 = vmatprep.subr.mxu0 0.0
  %127 = vmatpush1.msra.mxu0 0.0
  %128 = vmatprep.subr.mxu0 0.0
  %129 = vmatpush1.msra.mxu0 0.0
  %130 = vmatprep.subr.mxu0 0.0
  %131 = vmatpush1.msra.mxu0 0.0
  %132 = vmatprep.subr.mxu0 0.0
  %133 = vmatpush1.msra.mxu0 0.0
  %134 = vmatprep.subr.mxu0 0.0
  %135 = vmatpush1.msra.mxu0 0.0
  %136 = vmatprep.subr.mxu0 0.0
  %137 = vmatpush1.msra.mxu0 0.0
  %138 = vmatprep.subr.mxu0 0.0
  %139 = vmatpush1.msra.mxu0 0.0
  %140 = vmatprep.subr.mxu0 0.0
  %141 = vmatpush1.msra.mxu0 0.0
  %142 = vmatprep.subr.mxu0 0.0
  %143 = vmatpush1.msra.mxu0 0.0
  %144 = vmatprep.subr.mxu0 0.0
  %145 = vmatpush1.msra.mxu0 0.0
  %146 = vmatprep.subr.mxu0 0.0
  %147 = vmatpush1.msra.mxu0 0.0
  %148 = vmatprep.subr.mxu0 0.0
  %149 = vmatpush1.msra.mxu0 0.0
  %150 = vmatprep.subr.mxu0 0.0
  %151 = vmatpush1.msra.mxu0 0.0
  %152 = vmatprep.subr.mxu0 0.0
  %153 = vmatpush1.msra.mxu0 0.0
  %154 = vmatprep.subr.mxu0 0.0
  %155 = vmatpush1.msra.mxu0 0.0
  %156 = vmatprep.subr.mxu0 0.0
  %157 = vmatpush1.msra.mxu0 0.0
  %158 = vmatprep.mubr.f32.mxu0 0.0
  %159 = vmatmul.mubr.f32.gmra.mrb[0].mxu0 %v70
  %v160 = vpop.f32.mrb[0].mxu0
  %v161 = vadd.f32 0.0, %v160
  %v162 = vpop.f32.mrb[0].mxu0
  %163 = vmatprep.mubr.f32.mxu0 0.0
  %164 = vmatmul.mubr.f32.gmra.mrb[0].mxu0 %v71
  %v165 = vpop.f32.mrb[0].mxu0
  %v166 = vadd.f32 0.0, %v165
  %v167 = vpop.f32.mrb[0].mxu0
  %168 = vmatprep.mubr.f32.mxu0 0.0
  %169 = vmatmul.mubr.f32.gmra.mrb[0].mxu0 %v72
  %v170 = vpop.f32.mrb[0].mxu0
  %v171 = vadd.f32 0.0, %v170
  %v172 = vpop.f32.mrb[0].mxu0
  %173 = vmatprep.mubr.f32.mxu0 0.0
  %174 = vmatmul.mubr.f32.gmra.mrb[0].mxu0 %v73
  %v175 = vpop.f32.mrb[0].mxu0
  %v176 = vadd.f32 0.0, %v175
  %v177 = vpop.f32.mrb[0].mxu0
  %178 = vdwg.mxu0
  %v179 = vadd.f32 %v90, %v161
  %v180 = vadd.f32 %v91, %v166
  %v181 = vadd.f32 %v92, %v171
  %v182 = vadd.f32 %v93, %v176
  %183 = vst [vmem:[%s3] sm:$0xff] %v179
  %184 = vst [vmem:[%s3 + $0x8] sm:$0xff] %v180
  %185 = vst [vmem:[%s3 + $0x10] sm:$0xff] %v181
  %186 = vst [vmem:[%s3 + $0x18] sm:$0xff] %v182
  // Predicated region
  $region14: #{block_linear_forward.1} parent=0 // pred_check
    _
  $region15: #{block_linear_forward.1} parent=0 // pred_check_branch
    %188 = sbr.rel (0) target = $region17
  $region16: #{block_linear_forward.1} parent=0 // pred_region
    _
  $region17: #{block_linear_forward.1} parent=0 // pred_fallthru
    _
  // Predicated region
  $region18: #{block_linear_forward.1} parent=0 // pred_check
    _
  $region19: #{block_linear_forward.1} parent=0 // pred_check_branch
    %190 = sbr.rel (0) target = $region21
  $region20: #{block_linear_forward.1} parent=0 // pred_region
    _
  $region21: #{block_linear_forward.1} parent=0 // pred_fallthru
    _

</llo_original>
